<compile_context>
chip_gen: v5e
topology: v5e:2x2
jax: 0.10.0
libtpu: 0.0.40
codegen_flags: <defaults>
</compile_context>

<pallas_src>
import jax
import jax.numpy as jnp
from jax import lax
from jax.experimental import pallas as pl
from jax.experimental.pallas import tpu as pltpu


# ----------------------------------------------------------------------------
# Fused kernel: CNN stage + LSTM stack + linear head (all values, no scratch)
# ----------------------------------------------------------------------------
def make_fused_kernel(B, L, F, Hc, H, n_layers):
    Tc = L + 1          # Conv1d(k=2, pad=1) output length
    T = L + 2           # AvgPool1d(k=2, s=1, pad=1) output length == LSTM T

    def kernel(*refs):
        xa_ref, wc_ref, bc_ref = refs[0:3]
        lstm_refs = refs[3:3 + 3 * n_layers]
        wlin_ref = refs[3 + 3 * n_layers]
        blin_ref = refs[4 + 3 * n_layers]
        o_ref = refs[5 + 3 * n_layers]

        # ------------------------------------------------------------------
        # CNN: Conv1d(k=2, pad=1) as one tap-stacked matmul + ReLU.
        # xa_ref is the time-major, tap-stacked, pre-flattened input
        # (Tc*B, 2F) with row t*B+b = concat(x_pad[b, t], x_pad[b, t+1]).
        # ------------------------------------------------------------------
        conv = jnp.maximum(
            jnp.dot(xa_ref[...], wc_ref[...],
                    preferred_element_type=jnp.float32) + bc_ref[...],
            0.0)                                            # (Tc*B, Hc)

        # ------------------------------------------------------------------
        # AvgPool (count_include_pad=True) folded into the layer-0 input
        # projection by linearity (post-pool ReLU is a provable no-op):
        #   pooled[t] = 0.5*(conv[t-1] + conv[t])   (zero-padded ends)
        #   gx0[t]    = pooled[t] @ W_ih0 + b0 = cg[t-1] + cg[t] + b0
        # where W_ih0 already carries the 0.5 pool factor (and the sigmoid
        # gate pre-scale) from the wrapper.
        # ------------------------------------------------------------------
        wih0 = lstm_refs[0][...]                            # (Hc, 4H) pre-scaled
        b0 = lstm_refs[2][...]                              # (1, 4H)  pre-scaled
        cg = jnp.dot(conv, wih0, preferred_element_type=jnp.float32)  # (Tc*B, 4H)
        cg_t = [cg[t * B:(t + 1) * B, :] for t in range(Tc)]
        gx0 = ([cg_t[0] + b0]
               + [cg_t[t - 1] + cg_t[t] + b0 for t in range(1, Tc)]
               + [cg_t[Tc - 1] + b0])                       # T x (B, 4H)

        # ------------------------------------------------------------------
        # LSTM stack (PyTorch gate order i, f, g, o; combined bias b_ih+b_hh),
        # fully unrolled, all carries kept as values (vregs).
        # sigmoid(x) = 0.5*tanh(x/2) + 0.5, with the /2 folded into the i/f/o
        # weight columns in the wrapper -> one tanh pass per step over 4H.
        # ------------------------------------------------------------------
        xs = None            # per-timestep inputs for layers >= 1
        h = None
        for layer in range(n_layers):
            whh = lstm_refs[3 * layer + 1][...]             # (H, 4H) pre-scaled
            if layer > 0:
                wih = lstm_refs[3 * layer][...]             # (H, 4H) pre-scaled
                bias = lstm_refs[3 * layer + 2][...]        # (1, 4H) pre-scaled
            c = None
            hs = []
            for t in range(T):
                if layer == 0:
                    gx = gx0[t]
                else:
                    # Input projection depends only on the previous layer's
                    # step-t output -> off this layer's serial critical path
                    # (wavefronts with the layer-(l-1) recurrence).
                    gx = jnp.dot(xs[t], wih,
                                 preferred_element_type=jnp.float32) + bias
                if t == 0:
                    gates = gx                               # h0 = 0
                else:
                    gates = gx + jnp.dot(h, whh,
                                         preferred_element_type=jnp.float32)
                tg = jnp.tanh(gates)                         # single EUP pass
                i = 0.5 * tg[:, 0:H] + 0.5
                f = 0.5 * tg[:, H:2 * H] + 0.5
                g = tg[:, 2 * H:3 * H]
                o = 0.5 * tg[:, 3 * H:4 * H] + 0.5
                c = i * g if t == 0 else f * c + i * g       # c0 = 0
                h = o * jnp.tanh(c)
                if layer < n_layers - 1:
                    hs.append(h)
            xs = hs
            # inter-layer LSTM dropout is identity in eval mode

        # ------------------------------------------------------------------
        # Head: y = h_last @ W_lin + b_lin with N=1  ->  VPU mul + lane reduce.
        # ------------------------------------------------------------------
        y = jnp.sum(h * wlin_ref[...], axis=-1, keepdims=True) + blin_ref[...]
        o_ref[...] = y

    return kernel


# ----------------------------------------------------------------------------
# Wrapper: layout prep + weight pre-scaling in plain JAX, one fused pallas_call
# ----------------------------------------------------------------------------
def model_forward(params, x):
    # x: (B, seq_len, n_features)  == PyTorch `sequences`, float32
    B, L, F = x.shape
    W_conv = params["W_conv"]                      # (Hc, F, 2) PyTorch layout
    Hc = W_conv.shape[0]
    H = params["lstm"][0][1].shape[0]
    n_layers = len(params["lstm"])
    Tc = L + 1

    # Cheap layout prep (XLA side, once per call):
    x_pad = jnp.pad(x, ((0, 0), (1, 1), (0, 0)))             # pad time by 1
    # Tap-stacked, time-major, flattened conv input: (Tc*B, 2F)
    xa = jnp.concatenate([x_pad[:, 0:Tc, :], x_pad[:, 1:Tc + 1, :]], axis=2)
    xa = jnp.transpose(xa, (1, 0, 2)).reshape(Tc * B, 2 * F)
    # Stacked conv weight (2F, Hc) so conv is a single matmul.
    wc = jnp.concatenate([jnp.transpose(W_conv[:, :, 0]),
                          jnp.transpose(W_conv[:, :, 1])], axis=0)
    bc = params["b_conv"].reshape(1, Hc)

    # sigmoid(x) = 0.5*tanh(x/2) + 0.5  ->  pre-scale i/f/o gate columns by
    # 0.5 so the kernel needs only one tanh pass per step (g gate stays tanh).
    gate_scale = jnp.concatenate([
        jnp.full((H,), 0.5, jnp.float32),        # i
        jnp.full((H,), 0.5, jnp.float32),        # f
        jnp.ones((H,), jnp.float32),             # g
        jnp.full((H,), 0.5, jnp.float32),        # o
    ])

    args = [xa, wc, bc]
    for layer, (wih_t, whh_t, b) in enumerate(params["lstm"]):
        pool = 0.5 if layer == 0 else 1.0        # fold AvgPool 0.5 into W_ih0
        args += [wih_t * gate_scale[None, :] * pool,
                 whh_t * gate_scale[None, :],
                 (b * gate_scale).reshape(1, 4 * H)]
    args += [params["W_lin"].reshape(1, H), params["b_lin"].reshape(1, 1)]

    kernel = make_fused_kernel(B, L, F, Hc, H, n_layers)
    return pl.pallas_call(
        kernel,
        out_shape=jax.ShapeDtypeStruct((B, 1), jnp.float32),
        in_specs=[pl.BlockSpec(memory_space=pltpu.MemorySpace.VMEM)] * len(args),
        out_specs=pl.BlockSpec(memory_space=pltpu.MemorySpace.VMEM),
    )(*args)


# ----------------------------------------------------------------------------
# Deterministic parameter init (shapes follow the PyTorch module)
# ----------------------------------------------------------------------------
def init_params(key, n_features, cnn_hidden, lstm_hidden, lstm_layers):
    keys = jax.random.split(key, 4 + 3 * lstm_layers)
    p = {}
    s_conv = 1.0 / jnp.sqrt(n_features * 2.0)
    p["W_conv"] = s_conv * jax.random.normal(
        keys[0], (cnn_hidden, n_features, 2), jnp.float32)
    p["b_conv"] = s_conv * jax.random.normal(keys[1], (cnn_hidden,), jnp.float32)

    lstm = []
    for l in range(lstm_layers):
        in_dim = cnn_hidden if l == 0 else lstm_hidden
        s = 1.0 / jnp.sqrt(float(lstm_hidden))
        wih_t = s * jax.random.normal(
            keys[2 + 3 * l], (in_dim, 4 * lstm_hidden), jnp.float32)
        whh_t = s * jax.random.normal(
            keys[3 + 3 * l], (lstm_hidden, 4 * lstm_hidden), jnp.float32)
        b = s * jax.random.normal(
            keys[4 + 3 * l], (4 * lstm_hidden,), jnp.float32)   # b_ih + b_hh
        lstm.append((wih_t, whh_t, b))
    p["lstm"] = lstm

    s_lin = 1.0 / jnp.sqrt(float(lstm_hidden))
    p["W_lin"] = s_lin * jax.random.normal(keys[-2], (lstm_hidden,), jnp.float32)
    p["b_lin"] = s_lin * jax.random.normal(keys[-1], (1,), jnp.float32)
    return p


# ----------------------------------------------------------------------------
# Pure-JAX reference (for correctness check)
# ----------------------------------------------------------------------------
def ref_forward(params, x):
    xt = jnp.transpose(x, (0, 2, 1))                              # (B, F, L)
    conv = lax.conv_general_dilated(
        xt, params["W_conv"], window_strides=(1,), padding=[(1, 1)],
        dimension_numbers=("NCH", "OIH", "NCH"))
    conv = conv + params["b_conv"][None, :, None]
    conv = jnp.maximum(conv, 0.0)
    cp = jnp.pad(conv, ((0, 0), (0, 0), (1, 1)))
    pool = (cp[:, :, :-1] + cp[:, :, 1:]) * 0.5
    pool = jnp.maximum(pool, 0.0)
    seq = jnp.transpose(pool, (0, 2, 1))                          # (B, T, Hc)

    h = seq
    B = x.shape[0]
    for (wih_t, whh_t, b) in params["lstm"]:
        H = whh_t.shape[0]

        def step(carry, x_t):
            hh, cc = carry
            gates = x_t @ wih_t + hh @ whh_t + b[None, :]
            i = jax.nn.sigmoid(gates[:, 0:H])
            f = jax.nn.sigmoid(gates[:, H:2 * H])
            g = jnp.tanh(gates[:, 2 * H:3 * H])
            o = jax.nn.sigmoid(gates[:, 3 * H:4 * H])
            cc = f * cc + i * g
            hh = o * jnp.tanh(cc)
            return (hh, cc), hh

        init = (jnp.zeros((B, H), jnp.float32), jnp.zeros((B, H), jnp.float32))
        _, hs = lax.scan(step, init, jnp.transpose(h, (1, 0, 2)))
        h = jnp.transpose(hs, (1, 0, 2))

    h_last = h[:, -1, :]
    return h_last @ params["W_lin"].reshape(-1, 1) + params["b_lin"].reshape(1, 1)


if __name__ == "__main__":
    key = jax.random.PRNGKey(0)

    configs = [
        # (B, seq_len, n_features, cnn_hidden, lstm_hidden, lstm_layers)
        (2, 8, 4, 32, 32, 1),
        (2, 8, 4, 16, 32, 2),   # exercises multi-layer + Hc != H path
    ]
    for cfg_i, (B, seq_len, n_features, cnn_hidden, lstm_hidden,
                lstm_layers) in enumerate(configs):
        kx, kp, key = jax.random.split(key, 3)
        x = jax.random.normal(kx, (B, seq_len, n_features), jnp.float32)
        params = init_params(kp, n_features, cnn_hidden, lstm_hidden,
                             lstm_layers)

        y = jax.block_until_ready(model_forward(params, x))
        y_ref = jax.block_until_ready(ref_forward(params, x))

        assert y.shape == (B, 1), (cfg_i, y.shape)
        assert jnp.allclose(y, y_ref, atol=2e-3, rtol=2e-3), (cfg_i, y, y_ref)

    print("KERNEL_OK")
</pallas_src>

<mosaic_0001>
module attributes {stable_mosaic.version = 11 : i64} {
  func.func @kernel(%arg0: memref<18x8xf32, #tpu.memory_space<vmem>>, %arg1: memref<8x32xf32, #tpu.memory_space<vmem>>, %arg2: memref<1x32xf32, #tpu.memory_space<vmem>>, %arg3: memref<32x128xf32, #tpu.memory_space<vmem>>, %arg4: memref<32x128xf32, #tpu.memory_space<vmem>>, %arg5: memref<1x128xf32, #tpu.memory_space<vmem>>, %arg6: memref<1x32xf32, #tpu.memory_space<vmem>>, %arg7: memref<1x1xf32, #tpu.memory_space<vmem>>, %arg8: memref<2x1xf32, #tpu.memory_space<vmem>>) attributes {dimension_semantics = [], scalar_prefetch = 0 : i64, scratch_operands = 0 : i64, tpu.core_type = #tpu.core_type<tc>} {
    %c0 = arith.constant 0 : index
    %c0_0 = arith.constant 0 : index
    %0 = vector.load %arg0[%c0, %c0_0] : memref<18x8xf32, #tpu.memory_space<vmem>>, vector<18x8xf32>
    %c0_1 = arith.constant 0 : index
    %c0_2 = arith.constant 0 : index
    %1 = vector.load %arg1[%c0_1, %c0_2] : memref<8x32xf32, #tpu.memory_space<vmem>>, vector<8x32xf32>
    %cst = arith.constant dense<0.000000e+00> : vector<18x32xf32>
    %2 = tpu.matmul %0, %1, %cst {dimension_numbers = #tpu.dot_dimension_numbers<[1], [0], [0], [1], [0, 0, 1, 1], [], []>} : vector<18x8xf32>, vector<8x32xf32>, vector<18x32xf32> -> vector<18x32xf32>
    %c0_3 = arith.constant 0 : index
    %c0_4 = arith.constant 0 : index
    %3 = vector.load %arg2[%c0_3, %c0_4] : memref<1x32xf32, #tpu.memory_space<vmem>>, vector<1x32xf32>
    %4 = vector.broadcast %3 : vector<1x32xf32> to vector<18x32xf32>
    %5 = arith.addf %2, %4 : vector<18x32xf32>
    %cst_5 = arith.constant 0.000000e+00 : f32
    %6 = vector.broadcast %cst_5 : f32 to vector<18x32xf32>
    %7 = arith.maximumf %5, %6 : vector<18x32xf32>
    %c0_6 = arith.constant 0 : index
    %c0_7 = arith.constant 0 : index
    %8 = vector.load %arg3[%c0_6, %c0_7] : memref<32x128xf32, #tpu.memory_space<vmem>>, vector<32x128xf32>
    %c0_8 = arith.constant 0 : index
    %c0_9 = arith.constant 0 : index
    %9 = vector.load %arg5[%c0_8, %c0_9] : memref<1x128xf32, #tpu.memory_space<vmem>>, vector<1x128xf32>
    %cst_10 = arith.constant dense<0.000000e+00> : vector<18x128xf32>
    %10 = tpu.matmul %7, %8, %cst_10 {dimension_numbers = #tpu.dot_dimension_numbers<[1], [0], [0], [1], [0, 0, 1, 1], [], []>} : vector<18x32xf32>, vector<32x128xf32>, vector<18x128xf32> -> vector<18x128xf32>
    %11 = vector.extract_strided_slice %10 {offsets = [0, 0], sizes = [2, 128], strides = [1, 1]} : vector<18x128xf32> to vector<2x128xf32>
    %12 = vector.extract_strided_slice %10 {offsets = [2, 0], sizes = [2, 128], strides = [1, 1]} : vector<18x128xf32> to vector<2x128xf32>
    %13 = vector.extract_strided_slice %10 {offsets = [4, 0], sizes = [2, 128], strides = [1, 1]} : vector<18x128xf32> to vector<2x128xf32>
    %14 = vector.extract_strided_slice %10 {offsets = [6, 0], sizes = [2, 128], strides = [1, 1]} : vector<18x128xf32> to vector<2x128xf32>
    %15 = vector.extract_strided_slice %10 {offsets = [8, 0], sizes = [2, 128], strides = [1, 1]} : vector<18x128xf32> to vector<2x128xf32>
    %16 = vector.extract_strided_slice %10 {offsets = [10, 0], sizes = [2, 128], strides = [1, 1]} : vector<18x128xf32> to vector<2x128xf32>
    %17 = vector.extract_strided_slice %10 {offsets = [12, 0], sizes = [2, 128], strides = [1, 1]} : vector<18x128xf32> to vector<2x128xf32>
    %18 = vector.extract_strided_slice %10 {offsets = [14, 0], sizes = [2, 128], strides = [1, 1]} : vector<18x128xf32> to vector<2x128xf32>
    %19 = vector.extract_strided_slice %10 {offsets = [16, 0], sizes = [2, 128], strides = [1, 1]} : vector<18x128xf32> to vector<2x128xf32>
    %20 = vector.broadcast %9 : vector<1x128xf32> to vector<2x128xf32>
    %21 = arith.addf %11, %20 : vector<2x128xf32>
    %22 = arith.addf %11, %12 : vector<2x128xf32>
    %23 = vector.broadcast %9 : vector<1x128xf32> to vector<2x128xf32>
    %24 = arith.addf %22, %23 : vector<2x128xf32>
    %25 = arith.addf %12, %13 : vector<2x128xf32>
    %26 = vector.broadcast %9 : vector<1x128xf32> to vector<2x128xf32>
    %27 = arith.addf %25, %26 : vector<2x128xf32>
    %28 = arith.addf %13, %14 : vector<2x128xf32>
    %29 = vector.broadcast %9 : vector<1x128xf32> to vector<2x128xf32>
    %30 = arith.addf %28, %29 : vector<2x128xf32>
    %31 = arith.addf %14, %15 : vector<2x128xf32>
    %32 = vector.broadcast %9 : vector<1x128xf32> to vector<2x128xf32>
    %33 = arith.addf %31, %32 : vector<2x128xf32>
    %34 = arith.addf %15, %16 : vector<2x128xf32>
    %35 = vector.broadcast %9 : vector<1x128xf32> to vector<2x128xf32>
    %36 = arith.addf %34, %35 : vector<2x128xf32>
    %37 = arith.addf %16, %17 : vector<2x128xf32>
    %38 = vector.broadcast %9 : vector<1x128xf32> to vector<2x128xf32>
    %39 = arith.addf %37, %38 : vector<2x128xf32>
    %40 = arith.addf %17, %18 : vector<2x128xf32>
    %41 = vector.broadcast %9 : vector<1x128xf32> to vector<2x128xf32>
    %42 = arith.addf %40, %41 : vector<2x128xf32>
    %43 = arith.addf %18, %19 : vector<2x128xf32>
    %44 = vector.broadcast %9 : vector<1x128xf32> to vector<2x128xf32>
    %45 = arith.addf %43, %44 : vector<2x128xf32>
    %46 = vector.broadcast %9 : vector<1x128xf32> to vector<2x128xf32>
    %47 = arith.addf %19, %46 : vector<2x128xf32>
    %c0_11 = arith.constant 0 : index
    %c0_12 = arith.constant 0 : index
    %48 = vector.load %arg4[%c0_11, %c0_12] : memref<32x128xf32, #tpu.memory_space<vmem>>, vector<32x128xf32>
    %49 = math.tanh %21 : vector<2x128xf32>
    %50 = vector.extract_strided_slice %49 {offsets = [0, 0], sizes = [2, 32], strides = [1, 1]} : vector<2x128xf32> to vector<2x32xf32>
    %cst_13 = arith.constant 5.000000e-01 : f32
    %51 = vector.broadcast %cst_13 : f32 to vector<2x32xf32>
    %52 = arith.mulf %51, %50 : vector<2x32xf32>
    %cst_14 = arith.constant 5.000000e-01 : f32
    %53 = vector.broadcast %cst_14 : f32 to vector<2x32xf32>
    %54 = arith.addf %52, %53 : vector<2x32xf32>
    %55 = vector.extract_strided_slice %49 {offsets = [0, 64], sizes = [2, 32], strides = [1, 1]} : vector<2x128xf32> to vector<2x32xf32>
    %56 = vector.extract_strided_slice %49 {offsets = [0, 96], sizes = [2, 32], strides = [1, 1]} : vector<2x128xf32> to vector<2x32xf32>
    %cst_15 = arith.constant 5.000000e-01 : f32
    %57 = vector.broadcast %cst_15 : f32 to vector<2x32xf32>
    %58 = arith.mulf %57, %56 : vector<2x32xf32>
    %cst_16 = arith.constant 5.000000e-01 : f32
    %59 = vector.broadcast %cst_16 : f32 to vector<2x32xf32>
    %60 = arith.addf %58, %59 : vector<2x32xf32>
    %61 = arith.mulf %54, %55 : vector<2x32xf32>
    %62 = math.tanh %61 : vector<2x32xf32>
    %63 = arith.mulf %60, %62 : vector<2x32xf32>
    %cst_17 = arith.constant dense<0.000000e+00> : vector<2x128xf32>
    %64 = tpu.matmul %63, %48, %cst_17 {dimension_numbers = #tpu.dot_dimension_numbers<[1], [0], [0], [1], [0, 0, 1, 1], [], []>} : vector<2x32xf32>, vector<32x128xf32>, vector<2x128xf32> -> vector<2x128xf32>
    %65 = arith.addf %24, %64 : vector<2x128xf32>
    %66 = math.tanh %65 : vector<2x128xf32>
    %67 = vector.extract_strided_slice %66 {offsets = [0, 0], sizes = [2, 32], strides = [1, 1]} : vector<2x128xf32> to vector<2x32xf32>
    %cst_18 = arith.constant 5.000000e-01 : f32
    %68 = vector.broadcast %cst_18 : f32 to vector<2x32xf32>
    %69 = arith.mulf %68, %67 : vector<2x32xf32>
    %cst_19 = arith.constant 5.000000e-01 : f32
    %70 = vector.broadcast %cst_19 : f32 to vector<2x32xf32>
    %71 = arith.addf %69, %70 : vector<2x32xf32>
    %72 = vector.extract_strided_slice %66 {offsets = [0, 32], sizes = [2, 32], strides = [1, 1]} : vector<2x128xf32> to vector<2x32xf32>
    %cst_20 = arith.constant 5.000000e-01 : f32
    %73 = vector.broadcast %cst_20 : f32 to vector<2x32xf32>
    %74 = arith.mulf %73, %72 : vector<2x32xf32>
    %cst_21 = arith.constant 5.000000e-01 : f32
    %75 = vector.broadcast %cst_21 : f32 to vector<2x32xf32>
    %76 = arith.addf %74, %75 : vector<2x32xf32>
    %77 = vector.extract_strided_slice %66 {offsets = [0, 64], sizes = [2, 32], strides = [1, 1]} : vector<2x128xf32> to vector<2x32xf32>
    %78 = vector.extract_strided_slice %66 {offsets = [0, 96], sizes = [2, 32], strides = [1, 1]} : vector<2x128xf32> to vector<2x32xf32>
    %cst_22 = arith.constant 5.000000e-01 : f32
    %79 = vector.broadcast %cst_22 : f32 to vector<2x32xf32>
    %80 = arith.mulf %79, %78 : vector<2x32xf32>
    %cst_23 = arith.constant 5.000000e-01 : f32
    %81 = vector.broadcast %cst_23 : f32 to vector<2x32xf32>
    %82 = arith.addf %80, %81 : vector<2x32xf32>
    %83 = arith.mulf %76, %61 : vector<2x32xf32>
    %84 = arith.mulf %71, %77 : vector<2x32xf32>
    %85 = arith.addf %83, %84 : vector<2x32xf32>
    %86 = math.tanh %85 : vector<2x32xf32>
    %87 = arith.mulf %82, %86 : vector<2x32xf32>
    %cst_24 = arith.constant dense<0.000000e+00> : vector<2x128xf32>
    %88 = tpu.matmul %87, %48, %cst_24 {dimension_numbers = #tpu.dot_dimension_numbers<[1], [0], [0], [1], [0, 0, 1, 1], [], []>} : vector<2x32xf32>, vector<32x128xf32>, vector<2x128xf32> -> vector<2x128xf32>
    %89 = arith.addf %27, %88 : vector<2x128xf32>
    %90 = math.tanh %89 : vector<2x128xf32>
    %91 = vector.extract_strided_slice %90 {offsets = [0, 0], sizes = [2, 32], strides = [1, 1]} : vector<2x128xf32> to vector<2x32xf32>
    %cst_25 = arith.constant 5.000000e-01 : f32
    %92 = vector.broadcast %cst_25 : f32 to vector<2x32xf32>
    %93 = arith.mulf %92, %91 : vector<2x32xf32>
    %cst_26 = arith.constant 5.000000e-01 : f32
    %94 = vector.broadcast %cst_26 : f32 to vector<2x32xf32>
    %95 = arith.addf %93, %94 : vector<2x32xf32>
    %96 = vector.extract_strided_slice %90 {offsets = [0, 32], sizes = [2, 32], strides = [1, 1]} : vector<2x128xf32> to vector<2x32xf32>
    %cst_27 = arith.constant 5.000000e-01 : f32
    %97 = vector.broadcast %cst_27 : f32 to vector<2x32xf32>
    %98 = arith.mulf %97, %96 : vector<2x32xf32>
    %cst_28 = arith.constant 5.000000e-01 : f32
    %99 = vector.broadcast %cst_28 : f32 to vector<2x32xf32>
    %100 = arith.addf %98, %99 : vector<2x32xf32>
    %101 = vector.extract_strided_slice %90 {offsets = [0, 64], sizes = [2, 32], strides = [1, 1]} : vector<2x128xf32> to vector<2x32xf32>
    %102 = vector.extract_strided_slice %90 {offsets = [0, 96], sizes = [2, 32], strides = [1, 1]} : vector<2x128xf32> to vector<2x32xf32>
    %cst_29 = arith.constant 5.000000e-01 : f32
    %103 = vector.broadcast %cst_29 : f32 to vector<2x32xf32>
    %104 = arith.mulf %103, %102 : vector<2x32xf32>
    %cst_30 = arith.constant 5.000000e-01 : f32
    %105 = vector.broadcast %cst_30 : f32 to vector<2x32xf32>
    %106 = arith.addf %104, %105 : vector<2x32xf32>
    %107 = arith.mulf %100, %85 : vector<2x32xf32>
    %108 = arith.mulf %95, %101 : vector<2x32xf32>
    %109 = arith.addf %107, %108 : vector<2x32xf32>
    %110 = math.tanh %109 : vector<2x32xf32>
    %111 = arith.mulf %106, %110 : vector<2x32xf32>
    %cst_31 = arith.constant dense<0.000000e+00> : vector<2x128xf32>
    %112 = tpu.matmul %111, %48, %cst_31 {dimension_numbers = #tpu.dot_dimension_numbers<[1], [0], [0], [1], [0, 0, 1, 1], [], []>} : vector<2x32xf32>, vector<32x128xf32>, vector<2x128xf32> -> vector<2x128xf32>
    %113 = arith.addf %30, %112 : vector<2x128xf32>
    %114 = math.tanh %113 : vector<2x128xf32>
    %115 = vector.extract_strided_slice %114 {offsets = [0, 0], sizes = [2, 32], strides = [1, 1]} : vector<2x128xf32> to vector<2x32xf32>
    %cst_32 = arith.constant 5.000000e-01 : f32
    %116 = vector.broadcast %cst_32 : f32 to vector<2x32xf32>
    %117 = arith.mulf %116, %115 : vector<2x32xf32>
    %cst_33 = arith.constant 5.000000e-01 : f32
    %118 = vector.broadcast %cst_33 : f32 to vector<2x32xf32>
    %119 = arith.addf %117, %118 : vector<2x32xf32>
    %120 = vector.extract_strided_slice %114 {offsets = [0, 32], sizes = [2, 32], strides = [1, 1]} : vector<2x128xf32> to vector<2x32xf32>
    %cst_34 = arith.constant 5.000000e-01 : f32
    %121 = vector.broadcast %cst_34 : f32 to vector<2x32xf32>
    %122 = arith.mulf %121, %120 : vector<2x32xf32>
    %cst_35 = arith.constant 5.000000e-01 : f32
    %123 = vector.broadcast %cst_35 : f32 to vector<2x32xf32>
    %124 = arith.addf %122, %123 : vector<2x32xf32>
    %125 = vector.extract_strided_slice %114 {offsets = [0, 64], sizes = [2, 32], strides = [1, 1]} : vector<2x128xf32> to vector<2x32xf32>
    %126 = vector.extract_strided_slice %114 {offsets = [0, 96], sizes = [2, 32], strides = [1, 1]} : vector<2x128xf32> to vector<2x32xf32>
    %cst_36 = arith.constant 5.000000e-01 : f32
    %127 = vector.broadcast %cst_36 : f32 to vector<2x32xf32>
    %128 = arith.mulf %127, %126 : vector<2x32xf32>
    %cst_37 = arith.constant 5.000000e-01 : f32
    %129 = vector.broadcast %cst_37 : f32 to vector<2x32xf32>
    %130 = arith.addf %128, %129 : vector<2x32xf32>
    %131 = arith.mulf %124, %109 : vector<2x32xf32>
    %132 = arith.mulf %119, %125 : vector<2x32xf32>
    %133 = arith.addf %131, %132 : vector<2x32xf32>
    %134 = math.tanh %133 : vector<2x32xf32>
    %135 = arith.mulf %130, %134 : vector<2x32xf32>
    %cst_38 = arith.constant dense<0.000000e+00> : vector<2x128xf32>
    %136 = tpu.matmul %135, %48, %cst_38 {dimension_numbers = #tpu.dot_dimension_numbers<[1], [0], [0], [1], [0, 0, 1, 1], [], []>} : vector<2x32xf32>, vector<32x128xf32>, vector<2x128xf32> -> vector<2x128xf32>
    %137 = arith.addf %33, %136 : vector<2x128xf32>
    %138 = math.tanh %137 : vector<2x128xf32>
    %139 = vector.extract_strided_slice %138 {offsets = [0, 0], sizes = [2, 32], strides = [1, 1]} : vector<2x128xf32> to vector<2x32xf32>
    %cst_39 = arith.constant 5.000000e-01 : f32
    %140 = vector.broadcast %cst_39 : f32 to vector<2x32xf32>
    %141 = arith.mulf %140, %139 : vector<2x32xf32>
    %cst_40 = arith.constant 5.000000e-01 : f32
    %142 = vector.broadcast %cst_40 : f32 to vector<2x32xf32>
    %143 = arith.addf %141, %142 : vector<2x32xf32>
    %144 = vector.extract_strided_slice %138 {offsets = [0, 32], sizes = [2, 32], strides = [1, 1]} : vector<2x128xf32> to vector<2x32xf32>
    %cst_41 = arith.constant 5.000000e-01 : f32
    %145 = vector.broadcast %cst_41 : f32 to vector<2x32xf32>
    %146 = arith.mulf %145, %144 : vector<2x32xf32>
    %cst_42 = arith.constant 5.000000e-01 : f32
    %147 = vector.broadcast %cst_42 : f32 to vector<2x32xf32>
    %148 = arith.addf %146, %147 : vector<2x32xf32>
    %149 = vector.extract_strided_slice %138 {offsets = [0, 64], sizes = [2, 32], strides = [1, 1]} : vector<2x128xf32> to vector<2x32xf32>
    %150 = vector.extract_strided_slice %138 {offsets = [0, 96], sizes = [2, 32], strides = [1, 1]} : vector<2x128xf32> to vector<2x32xf32>
    %cst_43 = arith.constant 5.000000e-01 : f32
    %151 = vector.broadcast %cst_43 : f32 to vector<2x32xf32>
    %152 = arith.mulf %151, %150 : vector<2x32xf32>
    %cst_44 = arith.constant 5.000000e-01 : f32
    %153 = vector.broadcast %cst_44 : f32 to vector<2x32xf32>
    %154 = arith.addf %152, %153 : vector<2x32xf32>
    %155 = arith.mulf %148, %133 : vector<2x32xf32>
    %156 = arith.mulf %143, %149 : vector<2x32xf32>
    %157 = arith.addf %155, %156 : vector<2x32xf32>
    %158 = math.tanh %157 : vector<2x32xf32>
    %159 = arith.mulf %154, %158 : vector<2x32xf32>
    %cst_45 = arith.constant dense<0.000000e+00> : vector<2x128xf32>
    %160 = tpu.matmul %159, %48, %cst_45 {dimension_numbers = #tpu.dot_dimension_numbers<[1], [0], [0], [1], [0, 0, 1, 1], [], []>} : vector<2x32xf32>, vector<32x128xf32>, vector<2x128xf32> -> vector<2x128xf32>
    %161 = arith.addf %36, %160 : vector<2x128xf32>
    %162 = math.tanh %161 : vector<2x128xf32>
    %163 = vector.extract_strided_slice %162 {offsets = [0, 0], sizes = [2, 32], strides = [1, 1]} : vector<2x128xf32> to vector<2x32xf32>
    %cst_46 = arith.constant 5.000000e-01 : f32
    %164 = vector.broadcast %cst_46 : f32 to vector<2x32xf32>
    %165 = arith.mulf %164, %163 : vector<2x32xf32>
    %cst_47 = arith.constant 5.000000e-01 : f32
    %166 = vector.broadcast %cst_47 : f32 to vector<2x32xf32>
    %167 = arith.addf %165, %166 : vector<2x32xf32>
    %168 = vector.extract_strided_slice %162 {offsets = [0, 32], sizes = [2, 32], strides = [1, 1]} : vector<2x128xf32> to vector<2x32xf32>
    %cst_48 = arith.constant 5.000000e-01 : f32
    %169 = vector.broadcast %cst_48 : f32 to vector<2x32xf32>
    %170 = arith.mulf %169, %168 : vector<2x32xf32>
    %cst_49 = arith.constant 5.000000e-01 : f32
    %171 = vector.broadcast %cst_49 : f32 to vector<2x32xf32>
    %172 = arith.addf %170, %171 : vector<2x32xf32>
    %173 = vector.extract_strided_slice %162 {offsets = [0, 64], sizes = [2, 32], strides = [1, 1]} : vector<2x128xf32> to vector<2x32xf32>
    %174 = vector.extract_strided_slice %162 {offsets = [0, 96], sizes = [2, 32], strides = [1, 1]} : vector<2x128xf32> to vector<2x32xf32>
    %cst_50 = arith.constant 5.000000e-01 : f32
    %175 = vector.broadcast %cst_50 : f32 to vector<2x32xf32>
    %176 = arith.mulf %175, %174 : vector<2x32xf32>
    %cst_51 = arith.constant 5.000000e-01 : f32
    %177 = vector.broadcast %cst_51 : f32 to vector<2x32xf32>
    %178 = arith.addf %176, %177 : vector<2x32xf32>
    %179 = arith.mulf %172, %157 : vector<2x32xf32>
    %180 = arith.mulf %167, %173 : vector<2x32xf32>
    %181 = arith.addf %179, %180 : vector<2x32xf32>
    %182 = math.tanh %181 : vector<2x32xf32>
    %183 = arith.mulf %178, %182 : vector<2x32xf32>
    %cst_52 = arith.constant dense<0.000000e+00> : vector<2x128xf32>
    %184 = tpu.matmul %183, %48, %cst_52 {dimension_numbers = #tpu.dot_dimension_numbers<[1], [0], [0], [1], [0, 0, 1, 1], [], []>} : vector<2x32xf32>, vector<32x128xf32>, vector<2x128xf32> -> vector<2x128xf32>
    %185 = arith.addf %39, %184 : vector<2x128xf32>
    %186 = math.tanh %185 : vector<2x128xf32>
    %187 = vector.extract_strided_slice %186 {offsets = [0, 0], sizes = [2, 32], strides = [1, 1]} : vector<2x128xf32> to vector<2x32xf32>
    %cst_53 = arith.constant 5.000000e-01 : f32
    %188 = vector.broadcast %cst_53 : f32 to vector<2x32xf32>
    %189 = arith.mulf %188, %187 : vector<2x32xf32>
    %cst_54 = arith.constant 5.000000e-01 : f32
    %190 = vector.broadcast %cst_54 : f32 to vector<2x32xf32>
    %191 = arith.addf %189, %190 : vector<2x32xf32>
    %192 = vector.extract_strided_slice %186 {offsets = [0, 32], sizes = [2, 32], strides = [1, 1]} : vector<2x128xf32> to vector<2x32xf32>
    %cst_55 = arith.constant 5.000000e-01 : f32
    %193 = vector.broadcast %cst_55 : f32 to vector<2x32xf32>
    %194 = arith.mulf %193, %192 : vector<2x32xf32>
    %cst_56 = arith.constant 5.000000e-01 : f32
    %195 = vector.broadcast %cst_56 : f32 to vector<2x32xf32>
    %196 = arith.addf %194, %195 : vector<2x32xf32>
    %197 = vector.extract_strided_slice %186 {offsets = [0, 64], sizes = [2, 32], strides = [1, 1]} : vector<2x128xf32> to vector<2x32xf32>
    %198 = vector.extract_strided_slice %186 {offsets = [0, 96], sizes = [2, 32], strides = [1, 1]} : vector<2x128xf32> to vector<2x32xf32>
    %cst_57 = arith.constant 5.000000e-01 : f32
    %199 = vector.broadcast %cst_57 : f32 to vector<2x32xf32>
    %200 = arith.mulf %199, %198 : vector<2x32xf32>
    %cst_58 = arith.constant 5.000000e-01 : f32
    %201 = vector.broadcast %cst_58 : f32 to vector<2x32xf32>
    %202 = arith.addf %200, %201 : vector<2x32xf32>
    %203 = arith.mulf %196, %181 : vector<2x32xf32>
    %204 = arith.mulf %191, %197 : vector<2x32xf32>
    %205 = arith.addf %203, %204 : vector<2x32xf32>
    %206 = math.tanh %205 : vector<2x32xf32>
    %207 = arith.mulf %202, %206 : vector<2x32xf32>
    %cst_59 = arith.constant dense<0.000000e+00> : vector<2x128xf32>
    %208 = tpu.matmul %207, %48, %cst_59 {dimension_numbers = #tpu.dot_dimension_numbers<[1], [0], [0], [1], [0, 0, 1, 1], [], []>} : vector<2x32xf32>, vector<32x128xf32>, vector<2x128xf32> -> vector<2x128xf32>
    %209 = arith.addf %42, %208 : vector<2x128xf32>
    %210 = math.tanh %209 : vector<2x128xf32>
    %211 = vector.extract_strided_slice %210 {offsets = [0, 0], sizes = [2, 32], strides = [1, 1]} : vector<2x128xf32> to vector<2x32xf32>
    %cst_60 = arith.constant 5.000000e-01 : f32
    %212 = vector.broadcast %cst_60 : f32 to vector<2x32xf32>
    %213 = arith.mulf %212, %211 : vector<2x32xf32>
    %cst_61 = arith.constant 5.000000e-01 : f32
    %214 = vector.broadcast %cst_61 : f32 to vector<2x32xf32>
    %215 = arith.addf %213, %214 : vector<2x32xf32>
    %216 = vector.extract_strided_slice %210 {offsets = [0, 32], sizes = [2, 32], strides = [1, 1]} : vector<2x128xf32> to vector<2x32xf32>
    %cst_62 = arith.constant 5.000000e-01 : f32
    %217 = vector.broadcast %cst_62 : f32 to vector<2x32xf32>
    %218 = arith.mulf %217, %216 : vector<2x32xf32>
    %cst_63 = arith.constant 5.000000e-01 : f32
    %219 = vector.broadcast %cst_63 : f32 to vector<2x32xf32>
    %220 = arith.addf %218, %219 : vector<2x32xf32>
    %221 = vector.extract_strided_slice %210 {offsets = [0, 64], sizes = [2, 32], strides = [1, 1]} : vector<2x128xf32> to vector<2x32xf32>
    %222 = vector.extract_strided_slice %210 {offsets = [0, 96], sizes = [2, 32], strides = [1, 1]} : vector<2x128xf32> to vector<2x32xf32>
    %cst_64 = arith.constant 5.000000e-01 : f32
    %223 = vector.broadcast %cst_64 : f32 to vector<2x32xf32>
    %224 = arith.mulf %223, %222 : vector<2x32xf32>
    %cst_65 = arith.constant 5.000000e-01 : f32
    %225 = vector.broadcast %cst_65 : f32 to vector<2x32xf32>
    %226 = arith.addf %224, %225 : vector<2x32xf32>
    %227 = arith.mulf %220, %205 : vector<2x32xf32>
    %228 = arith.mulf %215, %221 : vector<2x32xf32>
    %229 = arith.addf %227, %228 : vector<2x32xf32>
    %230 = math.tanh %229 : vector<2x32xf32>
    %231 = arith.mulf %226, %230 : vector<2x32xf32>
    %cst_66 = arith.constant dense<0.000000e+00> : vector<2x128xf32>
    %232 = tpu.matmul %231, %48, %cst_66 {dimension_numbers = #tpu.dot_dimension_numbers<[1], [0], [0], [1], [0, 0, 1, 1], [], []>} : vector<2x32xf32>, vector<32x128xf32>, vector<2x128xf32> -> vector<2x128xf32>
    %233 = arith.addf %45, %232 : vector<2x128xf32>
    %234 = math.tanh %233 : vector<2x128xf32>
    %235 = vector.extract_strided_slice %234 {offsets = [0, 0], sizes = [2, 32], strides = [1, 1]} : vector<2x128xf32> to vector<2x32xf32>
    %cst_67 = arith.constant 5.000000e-01 : f32
    %236 = vector.broadcast %cst_67 : f32 to vector<2x32xf32>
    %237 = arith.mulf %236, %235 : vector<2x32xf32>
    %cst_68 = arith.constant 5.000000e-01 : f32
    %238 = vector.broadcast %cst_68 : f32 to vector<2x32xf32>
    %239 = arith.addf %237, %238 : vector<2x32xf32>
    %240 = vector.extract_strided_slice %234 {offsets = [0, 32], sizes = [2, 32], strides = [1, 1]} : vector<2x128xf32> to vector<2x32xf32>
    %cst_69 = arith.constant 5.000000e-01 : f32
    %241 = vector.broadcast %cst_69 : f32 to vector<2x32xf32>
    %242 = arith.mulf %241, %240 : vector<2x32xf32>
    %cst_70 = arith.constant 5.000000e-01 : f32
    %243 = vector.broadcast %cst_70 : f32 to vector<2x32xf32>
    %244 = arith.addf %242, %243 : vector<2x32xf32>
    %245 = vector.extract_strided_slice %234 {offsets = [0, 64], sizes = [2, 32], strides = [1, 1]} : vector<2x128xf32> to vector<2x32xf32>
    %246 = vector.extract_strided_slice %234 {offsets = [0, 96], sizes = [2, 32], strides = [1, 1]} : vector<2x128xf32> to vector<2x32xf32>
    %cst_71 = arith.constant 5.000000e-01 : f32
    %247 = vector.broadcast %cst_71 : f32 to vector<2x32xf32>
    %248 = arith.mulf %247, %246 : vector<2x32xf32>
    %cst_72 = arith.constant 5.000000e-01 : f32
    %249 = vector.broadcast %cst_72 : f32 to vector<2x32xf32>
    %250 = arith.addf %248, %249 : vector<2x32xf32>
    %251 = arith.mulf %244, %229 : vector<2x32xf32>
    %252 = arith.mulf %239, %245 : vector<2x32xf32>
    %253 = arith.addf %251, %252 : vector<2x32xf32>
    %254 = math.tanh %253 : vector<2x32xf32>
    %255 = arith.mulf %250, %254 : vector<2x32xf32>
    %cst_73 = arith.constant dense<0.000000e+00> : vector<2x128xf32>
    %256 = tpu.matmul %255, %48, %cst_73 {dimension_numbers = #tpu.dot_dimension_numbers<[1], [0], [0], [1], [0, 0, 1, 1], [], []>} : vector<2x32xf32>, vector<32x128xf32>, vector<2x128xf32> -> vector<2x128xf32>
    %257 = arith.addf %47, %256 : vector<2x128xf32>
    %258 = math.tanh %257 : vector<2x128xf32>
    %259 = vector.extract_strided_slice %258 {offsets = [0, 0], sizes = [2, 32], strides = [1, 1]} : vector<2x128xf32> to vector<2x32xf32>
    %cst_74 = arith.constant 5.000000e-01 : f32
    %260 = vector.broadcast %cst_74 : f32 to vector<2x32xf32>
    %261 = arith.mulf %260, %259 : vector<2x32xf32>
    %cst_75 = arith.constant 5.000000e-01 : f32
    %262 = vector.broadcast %cst_75 : f32 to vector<2x32xf32>
    %263 = arith.addf %261, %262 : vector<2x32xf32>
    %264 = vector.extract_strided_slice %258 {offsets = [0, 32], sizes = [2, 32], strides = [1, 1]} : vector<2x128xf32> to vector<2x32xf32>
    %cst_76 = arith.constant 5.000000e-01 : f32
    %265 = vector.broadcast %cst_76 : f32 to vector<2x32xf32>
    %266 = arith.mulf %265, %264 : vector<2x32xf32>
    %cst_77 = arith.constant 5.000000e-01 : f32
    %267 = vector.broadcast %cst_77 : f32 to vector<2x32xf32>
    %268 = arith.addf %266, %267 : vector<2x32xf32>
    %269 = vector.extract_strided_slice %258 {offsets = [0, 64], sizes = [2, 32], strides = [1, 1]} : vector<2x128xf32> to vector<2x32xf32>
    %270 = vector.extract_strided_slice %258 {offsets = [0, 96], sizes = [2, 32], strides = [1, 1]} : vector<2x128xf32> to vector<2x32xf32>
    %cst_78 = arith.constant 5.000000e-01 : f32
    %271 = vector.broadcast %cst_78 : f32 to vector<2x32xf32>
    %272 = arith.mulf %271, %270 : vector<2x32xf32>
    %cst_79 = arith.constant 5.000000e-01 : f32
    %273 = vector.broadcast %cst_79 : f32 to vector<2x32xf32>
    %274 = arith.addf %272, %273 : vector<2x32xf32>
    %275 = arith.mulf %268, %253 : vector<2x32xf32>
    %276 = arith.mulf %263, %269 : vector<2x32xf32>
    %277 = arith.addf %275, %276 : vector<2x32xf32>
    %278 = math.tanh %277 : vector<2x32xf32>
    %279 = arith.mulf %274, %278 : vector<2x32xf32>
    %c0_80 = arith.constant 0 : index
    %c0_81 = arith.constant 0 : index
    %280 = vector.load %arg6[%c0_80, %c0_81] : memref<1x32xf32, #tpu.memory_space<vmem>>, vector<1x32xf32>
    %281 = vector.broadcast %280 : vector<1x32xf32> to vector<2x32xf32>
    %282 = arith.mulf %279, %281 : vector<2x32xf32>
    %cst_82 = arith.constant dense<0.000000e+00> : vector<2xf32>
    %283 = vector.multi_reduction <add>, %282, %cst_82 [1] : vector<2x32xf32> to vector<2xf32>
    %284 = vector.shape_cast %283 : vector<2xf32> to vector<2x1xf32>
    %c0_83 = arith.constant 0 : index
    %c0_84 = arith.constant 0 : index
    %285 = vector.load %arg7[%c0_83, %c0_84] : memref<1x1xf32, #tpu.memory_space<vmem>>, vector<1x1xf32>
    %286 = vector.broadcast %285 : vector<1x1xf32> to vector<2x1xf32>
    %287 = arith.addf %284, %286 : vector<2x1xf32>
    %c0_85 = arith.constant 0 : index
    %c0_86 = arith.constant 0 : index
    %288 = vector.load %arg8[%c0_85, %c0_86] : memref<2x1xf32, #tpu.memory_space<vmem>>, vector<2x1xf32>
    tpu.vector_store %arg8[%c0_85, %c0_86], %287 {strides = array<i32>} : memref<2x1xf32, #tpu.memory_space<vmem>>, vector<2x1xf32>,
    return
  }
}

</mosaic_0001>

<llo_original>
// kernel: tpu_custom_call.1
$region0: #{tpu_custom_call.1}
  #allocation0 [shape = 'u32[]', space=smem, size = 0x4, offset = 0x4, fixed_abs, tag = 'smem constant byte address 0x4 - core index']
  #allocation1 [shape = 'u32[72,128]{1,0:T(1,128)}', space=vmem, size = 0x9000, scoped, tag = 'internal scratch']
  #allocation2 [shape = 'f32[1,1]{1,0:T(1,128)S(1)}', space=vmem, size = 0x200, scoped, tag = 'scoped memory for tpu_custom_call.1']
  %s0 = inlined_call_operand.vmem [shape: f32[18,8], index: 0, kind: input, shape index: {}]
  %s1 = inlined_call_operand.hbm [shape: f32[8,32], index: 1, kind: input, shape index: {}]
  %s2 = inlined_call_operand.vmem [shape: f32[1,32], index: 2, kind: input, shape index: {}]
  %s3 = inlined_call_operand.vmem [shape: f32[32,128], index: 3, kind: input, shape index: {}]
  %s4 = inlined_call_operand.hbm [shape: f32[32,128], index: 4, kind: input, shape index: {}]
  %s5 = inlined_call_operand.vmem [shape: f32[1,128], index: 5, kind: input, shape index: {}]
  %s6 = inlined_call_operand.vmem [shape: f32[1,32], index: 6, kind: input, shape index: {}]
  %s7 = inlined_call_operand.<no memory space> [shape: f32[1,1], index: 7, kind: input, shape index: {}]
  %s8 = inlined_call_operand.vmem [shape: f32[2,1], index: 8, kind: output, shape index: {}]
  %s9 = sld [smem:[#allocation0]]
  $region50: #{tpu_custom_call.1} parent=0
    _
  %s11 = ssub.s32 1, %s9
  %s12 = scalar_select 0, %s11, %s9
  %v13 = vstv %s7
  %14 = vst [vmem:[#allocation2] sm:$0x1] %v13
  $region1: #{tpu_custom_call.1} parent=0
    #allocation3 [shape = 'u8[4096]{0}', space=vmem, size = 0x1000, scoped, tag = 'input window, operand 1, single buffered']
    #allocation4 [shape = 's32[1]{0}', space=sflag, size = 0x4, scoped, tag = 'scoped memory for tpu_custom_call.1']
    #allocation5 [shape = 'u8[16384]{0}', space=vmem, size = 0x4000, scoped, tag = 'input window, operand 4, single buffered']
    #allocation6 [shape = 's32[1]{0}', space=sflag, size = 0x4, scoped, tag = 'scoped memory for tpu_custom_call.1']
    %15 = vsyncpa [#allocation4], 0
    %16 = vsyncpa [#allocation6], 0
    // Predicated region
    $region2: #{tpu_custom_call.1} parent=1 // pred_check
      _
    $region3: #{tpu_custom_call.1} parent=1 // pred_check_branch
      %18 = sbr.rel (0) target = $region5
    $region4: #{tpu_custom_call.1} parent=1 // pred_region
      _
    $region5: #{tpu_custom_call.1} parent=1 // pred_fallthru
      _
    // Predicated region
    $region6: #{tpu_custom_call.1} parent=1 // pred_check
      _
    $region7: #{tpu_custom_call.1} parent=1 // pred_check_branch
      %20 = sbr.rel (0) target = $region9
    $region8: #{tpu_custom_call.1} parent=1 // pred_region
      %22 = vsyncadd [#allocation4], 0
      %s24 = sshll.u32 %s1, 4
      %s25 = int_to_ptr.hbm [resolvable:$true] %s24
      %s26 = sshll.u32 [#allocation3], 4
      %s27 = int_to_ptr.vmem [resolvable:$true] %s26
      %29 = dma.hbm_to_vmem [thread:$0]  %s25, 128, %s27, [#allocation4]
    $region9: #{tpu_custom_call.1} parent=1 // pred_fallthru
      _
    // Predicated region
    $region10: #{tpu_custom_call.1} parent=1 // pred_check
      _
    $region11: #{tpu_custom_call.1} parent=1 // pred_check_branch
      %31 = sbr.rel (0) target = $region13
    $region12: #{tpu_custom_call.1} parent=1 // pred_region
      _
    $region13: #{tpu_custom_call.1} parent=1 // pred_fallthru
      _
    // Predicated region
    $region14: #{tpu_custom_call.1} parent=1 // pred_check
      _
    $region15: #{tpu_custom_call.1} parent=1 // pred_check_branch
      %33 = sbr.rel (0) target = $region17
    $region16: #{tpu_custom_call.1} parent=1 // pred_region
      _
    $region17: #{tpu_custom_call.1} parent=1 // pred_fallthru
      _
    // Predicated region
    $region18: #{tpu_custom_call.1} parent=1 // pred_check
      _
    $region19: #{tpu_custom_call.1} parent=1 // pred_check_branch
      %35 = sbr.rel (0) target = $region21
    $region20: #{tpu_custom_call.1} parent=1 // pred_region
      %37 = vsyncadd [#allocation6], 0
      %s38 = sshll.u32 %s4, 4
      %s39 = int_to_ptr.hbm [resolvable:$true] %s38
      %s40 = sshll.u32 [#allocation5], 4
      %s41 = int_to_ptr.vmem [resolvable:$true] %s40
      %46 = dma.hbm_to_vmem [thread:$0]  %s39, 512, %s41, [#allocation6], 128, 128, 8
    $region21: #{tpu_custom_call.1} parent=1 // pred_fallthru
      _
    // Predicated region
    $region22: #{tpu_custom_call.1} parent=1 // pred_check
      _
    $region23: #{tpu_custom_call.1} parent=1 // pred_check_branch
      %48 = sbr.rel (0) target = $region25
    $region24: #{tpu_custom_call.1} parent=1 // pred_region
      _
    $region25: #{tpu_custom_call.1} parent=1 // pred_fallthru
      _
    // Predicated region
    $region26: #{tpu_custom_call.1} parent=1 // pred_check
      _
    $region27: #{tpu_custom_call.1} parent=1 // pred_check_branch
      %50 = sbr.rel (0) target = $region29
    $region28: #{tpu_custom_call.1} parent=1 // pred_region
      _
    $region29: #{tpu_custom_call.1} parent=1 // pred_fallthru
      _
    // Predicated region
    $region30: #{tpu_custom_call.1} parent=1 // pred_check
      _
    $region31: #{tpu_custom_call.1} parent=1 // pred_check_branch
      %52 = sbr.rel (0) target = $region33
    $region32: #{tpu_custom_call.1} parent=1 // pred_region
      _
    $region33: #{tpu_custom_call.1} parent=1 // pred_fallthru
      _
    // Predicated region
    $region34: #{tpu_custom_call.1} parent=1 // pred_check
      _
    $region35: #{tpu_custom_call.1} parent=1 // pred_check_branch
      %54 = sbr.rel (0) target = $region37
    $region36: #{tpu_custom_call.1} parent=1 // pred_region
      %56 = dma.done [#allocation4], 128
    $region37: #{tpu_custom_call.1} parent=1 // pred_fallthru
      _
    // Predicated region
    $region38: #{tpu_custom_call.1} parent=1 // pred_check
      _
    $region39: #{tpu_custom_call.1} parent=1 // pred_check_branch
      %58 = sbr.rel (0) target = $region41
    $region40: #{tpu_custom_call.1} parent=1 // pred_region
      %60 = dma.done [#allocation6], 512
    $region41: #{tpu_custom_call.1} parent=1 // pred_fallthru
      _
    %v61 = vld [vmem:[%s0] sm:$0xff]
    %v62 = vld [vmem:[%s0 + $0x8] sm:$0xff]
    %v63 = vld [vmem:[%s0 + $0x10] sm:$0x3]
    %v64 = vld [vmem:[#allocation3] sm:$0xff]
    %v65 = vld [vmem:[%s2] sm:$0x1]
    %v67 = vperm.slane %v65, 0
    %vm69 = vcmask 64512
    %v71 = vsel %vm69, %v61, 0
    %v74 = vsel %vm69, %v62, 0
    %v77 = vsel %vm69, %v63, 0
    %79 = vmatpush.msra.mxu0 0.0
    %80 = vmatpush.msra.mxu0 0.0
    %81 = vmatpush.msra.mxu0 0.0
    %82 = vmatpush.msra.mxu0 0.0
    %83 = vmatpush.msra.mxu0 0.0
    %84 = vmatpush.msra.mxu0 0.0
    %85 = vmatpush.msra.mxu0 0.0
    %86 = vmatpush.msra.mxu0 0.0
    %87 = vmatpush.msra.mxu0 0.0
    %88 = vmatpush.msra.mxu0 0.0
    %89 = vmatpush.msra.mxu0 0.0
    %90 = vmatpush.msra.mxu0 0.0
    %91 = vmatpush.msra.mxu0 0.0
    %92 = vmatpush.msra.mxu0 0.0
    %93 = vmatpush.msra.mxu0 0.0
    %94 = vmatpush.msra.mxu0 %v64
    %95 = vmatmul.f32.gmra.mxu0 %v71
    %v96 = vpop.f32.mrf.mxu0
    %v97 = vadd.f32 %v67, %v96
    %98 = vmatmul.f32.gmra.mxu0 %v74
    %v99 = vpop.f32.mrf.mxu0
    %v100 = vadd.f32 %v67, %v99
    %101 = vmatmul.f32.gmra.mxu0 %v77
    %v102 = vpop.f32.mrf.mxu0
    %v103 = vadd.f32 %v67, %v102
    %104 = vdwg.mxu0
    %v105 = vmax.f32 %v97, 0.0
    %v106 = vmax.f32 %v100, 0.0
    %v107 = vmax.f32 %v103, 0.0
    %v108 = vld [vmem:[%s3] sm:$0xff]
    %v109 = vld [vmem:[%s3 + $0x8] sm:$0xff]
    %v110 = vld [vmem:[%s3 + $0x10] sm:$0xff]
    %v111 = vld [vmem:[%s3 + $0x18] sm:$0xff]
    %v112 = vld [vmem:[%s5] sm:$0x1]
    %vm113 = vcmask 261120
    %v115 = vsel %vm113, %v105, 0
    %v118 = vsel %vm113, %v106, 0
    %v121 = vsel %vm113, %v107, 0
    %123 = vmatpush.msra.mxu0 0.0
    %124 = vmatpush.msra.mxu0 0.0
    %125 = vmatpush.msra.mxu0 0.0
    %126 = vmatpush.msra.mxu0 0.0
    %127 = vmatpush.msra.mxu0 0.0
    %128 = vmatpush.msra.mxu0 0.0
    %129 = vmatpush.msra.mxu0 0.0
    %130 = vmatpush.msra.mxu0 0.0
    %131 = vmatpush.msra.mxu0 0.0
    %132 = vmatpush.msra.mxu0 0.0
    %133 = vmatpush.msra.mxu0 0.0
    %134 = vmatpush.msra.mxu0 0.0
    %135 = vmatpush.msra.mxu0 %v111
    %136 = vmatpush.msra.mxu0 %v110
    %137 = vmatpush.msra.mxu0 %v109
    %138 = vmatpush.msra.mxu0 %v108
    %139 = vmatmul.f32.gmra.mxu0 %v115
    %v140 = vpop.f32.mrf.mxu0
    %v141 = vadd.f32 0.0, %v140
    %142 = vmatmul.f32.gmra.mxu0 %v118
    %v143 = vpop.f32.mrf.mxu0
    %v144 = vadd.f32 0.0, %v143
    %145 = vmatmul.f32.gmra.mxu0 %v121
    %v146 = vpop.f32.mrf.mxu0
    %v147 = vadd.f32 0.0, %v146
    %148 = vdwg.mxu0
    %v150 = vperm.slane %v112, 0
    %v152 = vadd.f32 %v141, %v150
    %v154 = vrot.slane %v141, 2
    %v156 = vadd.f32 %v141, %v154
    %v157 = vadd.f32 %v156, %v150
    %v159 = vrot.slane %v144, 2
    %v161 = vadd.f32 %v141, %v159
    %v162 = vadd.f32 %v161, %v150
    %v163 = vadd.f32 %v144, %v159
    %v164 = vadd.f32 %v163, %v150
    %v166 = vrot.slane %v147, 2
    %v168 = vadd.f32 %v144, %v166
    %v169 = vadd.f32 %v168, %v150
    %v170 = vadd.f32 %v147, %v150
    %v171 = vld [vmem:[#allocation5] sm:$0xff]
    %v172 = vld [vmem:[#allocation5 + $0x8] sm:$0xff]
    %v173 = vld [vmem:[#allocation5 + $0x10] sm:$0xff]
    %v174 = vld [vmem:[#allocation5 + $0x18] sm:$0xff]
    %v175 = vtanh.pop %v152
    %v176 = vmul.f32 %v175, 0.5
    %v177 = vadd.f32 %v176, 0.5
    %179 = vrot.lane.b32.xlu0 %v175, 64
    %v180 = vpop.permute.xlu0 %179
    %v182 = vmul.f32 %v177, %v180
    %v183 = vtanh.pop %v182
    %185 = vrot.lane.b32.xlu0 %v183, 96
    %v186 = vpop.permute.xlu0 %185
    %v188 = vmul.f32 %v177, %v186
    %190 = vrot.lane.b32.xlu0 %v188, 32
    %v191 = vpop.permute.xlu0 %190
    %v192 = vsel %vm113, %v191, 0
    %194 = vmatpush.msra.mxu0 0.0
    %195 = vmatpush.msra.mxu0 0.0
    %196 = vmatpush.msra.mxu0 0.0
    %197 = vmatpush.msra.mxu0 0.0
    %198 = vmatpush.msra.mxu0 0.0
    %199 = vmatpush.msra.mxu0 0.0
    %200 = vmatpush.msra.mxu0 0.0
    %201 = vmatpush.msra.mxu0 0.0
    %202 = vmatpush.msra.mxu0 0.0
    %203 = vmatpush.msra.mxu0 0.0
    %204 = vmatpush.msra.mxu0 0.0
    %205 = vmatpush.msra.mxu0 0.0
    %206 = vmatpush.msra.mxu0 %v174
    %207 = vmatpush.msra.mxu0 %v173
    %208 = vmatpush.msra.mxu0 %v172
    %209 = vmatpush.msra.mxu0 %v171
    %210 = vmatmul.f32.gmra.mxu0 %v192
    %v211 = vpop.f32.mrf.mxu0
    %v212 = vadd.f32 0.0, %v211
    %213 = vdwg.mxu0
    %v214 = vadd.f32 %v157, %v212
    %v215 = vtanh.pop %v214
    %v216 = vmul.f32 %v215, 0.5
    %v217 = vadd.f32 %v216, 0.5
    %219 = vrot.lane.b32.xlu0 %v182, 32
    %v220 = vpop.permute.xlu0 %219
    %v222 = vmul.f32 %v217, %v220
    %224 = vrot.lane.b32.xlu0 %v215, 64
    %v225 = vpop.permute.xlu0 %224
    %v227 = vmul.f32 %v217, %v225
    %229 = vrot.lane.b32.xlu0 %v227, 32
    %v230 = vpop.permute.xlu0 %229
    %v232 = vadd.f32 %v222, %v230
    %v233 = vtanh.pop %v232
    %235 = vrot.lane.b32.xlu0 %v233, 64
    %v236 = vpop.permute.xlu0 %235
    %v238 = vmul.f32 %v217, %v236
    %240 = vrot.lane.b32.xlu0 %v238, 32
    %v241 = vpop.permute.xlu0 %240
    %v242 = vsel %vm113, %v241, 0
    %244 = vmatpush.msra.mxu0 0.0
    %245 = vmatpush.msra.mxu0 0.0
    %246 = vmatpush.msra.mxu0 0.0
    %247 = vmatpush.msra.mxu0 0.0
    %248 = vmatpush.msra.mxu0 0.0
    %249 = vmatpush.msra.mxu0 0.0
    %250 = vmatpush.msra.mxu0 0.0
    %251 = vmatpush.msra.mxu0 0.0
    %252 = vmatpush.msra.mxu0 0.0
    %253 = vmatpush.msra.mxu0 0.0
    %254 = vmatpush.msra.mxu0 0.0
    %255 = vmatpush.msra.mxu0 0.0
    %256 = vmatpush.msra.mxu0 %v174
    %257 = vmatpush.msra.mxu0 %v173
    %258 = vmatpush.msra.mxu0 %v172
    %259 = vmatpush.msra.mxu0 %v171
    %260 = vmatmul.f32.gmra.mxu0 %v242
    %v261 = vpop.f32.mrf.mxu0
    %v262 = vadd.f32 0.0, %v261
    %263 = vdwg.mxu0
    %v265 = vrot.slane %v262, 6
    %v267 = vadd.f32 %v157, %v265
    %v268 = vtanh.pop %v267
    %v269 = vmul.f32 %v268, 0.5
    %v270 = vadd.f32 %v269, 0.5
    %v272 = vrot.slane %v232, 6
    %v274 = vmul.f32 %v270, %v272
    %276 = vrot.lane.b32.xlu0 %v268, 64
    %v277 = vpop.permute.xlu0 %276
    %v279 = vmul.f32 %v270, %v277
    %281 = vrot.lane.b32.xlu0 %v279, 32
    %v282 = vpop.permute.xlu0 %281
    %v284 = vadd.f32 %v274, %v282
    %v285 = vtanh.pop %v284
    %287 = vrot.lane.b32.xlu0 %v285, 64
    %v288 = vpop.permute.xlu0 %287
    %v290 = vmul.f32 %v270, %v288
    %v292 = vrot.slane %v290, 2
    %293 = vrot.lane.b32.xlu0 %v292, 32
    %v294 = vpop.permute.xlu0 %293
    %v295 = vsel %vm113, %v294, 0
    %297 = vmatpush.msra.mxu0 0.0
    %298 = vmatpush.msra.mxu0 0.0
    %299 = vmatpush.msra.mxu0 0.0
    %300 = vmatpush.msra.mxu0 0.0
    %301 = vmatpush.msra.mxu0 0.0
    %302 = vmatpush.msra.mxu0 0.0
    %303 = vmatpush.msra.mxu0 0.0
    %304 = vmatpush.msra.mxu0 0.0
    %305 = vmatpush.msra.mxu0 0.0
    %306 = vmatpush.msra.mxu0 0.0
    %307 = vmatpush.msra.mxu0 0.0
    %308 = vmatpush.msra.mxu0 0.0
    %309 = vmatpush.msra.mxu0 %v174
    %310 = vmatpush.msra.mxu0 %v173
    %311 = vmatpush.msra.mxu0 %v172
    %312 = vmatpush.msra.mxu0 %v171
    %313 = vmatmul.f32.gmra.mxu0 %v295
    %v314 = vpop.f32.mrf.mxu0
    %v315 = vadd.f32 0.0, %v314
    %316 = vdwg.mxu0
    %v318 = vrot.slane %v315, 4
    %v320 = vadd.f32 %v157, %v318
    %v321 = vtanh.pop %v320
    %v322 = vmul.f32 %v321, 0.5
    %v323 = vadd.f32 %v322, 0.5
    %v325 = vrot.slane %v284, 6
    %v327 = vmul.f32 %v323, %v325
    %329 = vrot.lane.b32.xlu0 %v321, 64
    %v330 = vpop.permute.xlu0 %329
    %v332 = vmul.f32 %v323, %v330
    %334 = vrot.lane.b32.xlu0 %v332, 32
    %v335 = vpop.permute.xlu0 %334
    %v337 = vadd.f32 %v327, %v335
    %v338 = vtanh.pop %v337
    %340 = vrot.lane.b32.xlu0 %v338, 64
    %v341 = vpop.permute.xlu0 %340
    %v343 = vmul.f32 %v323, %v341
    %v345 = vrot.slane %v343, 4
    %346 = vrot.lane.b32.xlu0 %v345, 32
    %v347 = vpop.permute.xlu0 %346
    %v348 = vsel %vm113, %v347, 0
    %350 = vmatpush.msra.mxu0 0.0
    %351 = vmatpush.msra.mxu0 0.0
    %352 = vmatpush.msra.mxu0 0.0
    %353 = vmatpush.msra.mxu0 0.0
    %354 = vmatpush.msra.mxu0 0.0
    %355 = vmatpush.msra.mxu0 0.0
    %356 = vmatpush.msra.mxu0 0.0
    %357 = vmatpush.msra.mxu0 0.0
    %358 = vmatpush.msra.mxu0 0.0
    %359 = vmatpush.msra.mxu0 0.0
    %360 = vmatpush.msra.mxu0 0.0
    %361 = vmatpush.msra.mxu0 0.0
    %362 = vmatpush.msra.mxu0 %v174
    %363 = vmatpush.msra.mxu0 %v173
    %364 = vmatpush.msra.mxu0 %v172
    %365 = vmatpush.msra.mxu0 %v171
    %366 = vmatmul.f32.gmra.mxu0 %v348
    %v367 = vpop.f32.mrf.mxu0
    %v368 = vadd.f32 0.0, %v367
    %369 = vdwg.mxu0
    %v371 = vrot.slane %v368, 2
    %v373 = vadd.f32 %v162, %v371
    %v374 = vtanh.pop %v373
    %v375 = vmul.f32 %v374, 0.5
    %v376 = vadd.f32 %v375, 0.5
    %v378 = vrot.slane %v337, 6
    %v380 = vmul.f32 %v376, %v378
    %382 = vrot.lane.b32.xlu0 %v374, 64
    %v383 = vpop.permute.xlu0 %382
    %v385 = vmul.f32 %v376, %v383
    %387 = vrot.lane.b32.xlu0 %v385, 32
    %v388 = vpop.permute.xlu0 %387
    %v390 = vadd.f32 %v380, %v388
    %v391 = vtanh.pop %v390
    %393 = vrot.lane.b32.xlu0 %v391, 64
    %v394 = vpop.permute.xlu0 %393
    %v396 = vmul.f32 %v376, %v394
    %v398 = vrot.slane %v396, 6
    %399 = vrot.lane.b32.xlu0 %v398, 32
    %v400 = vpop.permute.xlu0 %399
    %v401 = vsel %vm113, %v400, 0
    %403 = vmatpush.msra.mxu0 0.0
    %404 = vmatpush.msra.mxu0 0.0
    %405 = vmatpush.msra.mxu0 0.0
    %406 = vmatpush.msra.mxu0 0.0
    %407 = vmatpush.msra.mxu0 0.0
    %408 = vmatpush.msra.mxu0 0.0
    %409 = vmatpush.msra.mxu0 0.0
    %410 = vmatpush.msra.mxu0 0.0
    %411 = vmatpush.msra.mxu0 0.0
    %412 = vmatpush.msra.mxu0 0.0
    %413 = vmatpush.msra.mxu0 0.0
    %414 = vmatpush.msra.mxu0 0.0
    %415 = vmatpush.msra.mxu0 %v174
    %416 = vmatpush.msra.mxu0 %v173
    %417 = vmatpush.msra.mxu0 %v172
    %418 = vmatpush.msra.mxu0 %v171
    %419 = vmatmul.f32.gmra.mxu0 %v401
    %v420 = vpop.f32.mrf.mxu0
    %v421 = vadd.f32 0.0, %v420
    %422 = vdwg.mxu0
    %v423 = vadd.f32 %v164, %v421
    %v424 = vtanh.pop %v423
    %v425 = vmul.f32 %v424, 0.5
    %v426 = vadd.f32 %v425, 0.5
    %v428 = vrot.slane %v390, 6
    %v430 = vmul.f32 %v426, %v428
    %432 = vrot.lane.b32.xlu0 %v424, 64
    %v433 = vpop.permute.xlu0 %432
    %v435 = vmul.f32 %v426, %v433
    %437 = vrot.lane.b32.xlu0 %v435, 32
    %v438 = vpop.permute.xlu0 %437
    %v440 = vadd.f32 %v430, %v438
    %v441 = vtanh.pop %v440
    %443 = vrot.lane.b32.xlu0 %v441, 64
    %v444 = vpop.permute.xlu0 %443
    %v446 = vmul.f32 %v426, %v444
    %448 = vrot.lane.b32.xlu0 %v446, 32
    %v449 = vpop.permute.xlu0 %448
    %v450 = vsel %vm113, %v449, 0
    %452 = vmatpush.msra.mxu0 0.0
    %453 = vmatpush.msra.mxu0 0.0
    %454 = vmatpush.msra.mxu0 0.0
    %455 = vmatpush.msra.mxu0 0.0
    %456 = vmatpush.msra.mxu0 0.0
    %457 = vmatpush.msra.mxu0 0.0
    %458 = vmatpush.msra.mxu0 0.0
    %459 = vmatpush.msra.mxu0 0.0
    %460 = vmatpush.msra.mxu0 0.0
    %461 = vmatpush.msra.mxu0 0.0
    %462 = vmatpush.msra.mxu0 0.0
    %463 = vmatpush.msra.mxu0 0.0
    %464 = vmatpush.msra.mxu0 %v174
    %465 = vmatpush.msra.mxu0 %v173
    %466 = vmatpush.msra.mxu0 %v172
    %467 = vmatpush.msra.mxu0 %v171
    %468 = vmatmul.f32.gmra.mxu0 %v450
    %v469 = vpop.f32.mrf.mxu0
    %v470 = vadd.f32 0.0, %v469
    %471 = vdwg.mxu0
    %v473 = vrot.slane %v470, 6
    %v475 = vadd.f32 %v164, %v473
    %v476 = vtanh.pop %v475
    %v477 = vmul.f32 %v476, 0.5
    %v478 = vadd.f32 %v477, 0.5
    %v480 = vrot.slane %v440, 6
    %v482 = vmul.f32 %v478, %v480
    %484 = vrot.lane.b32.xlu0 %v476, 64
    %v485 = vpop.permute.xlu0 %484
    %v487 = vmul.f32 %v478, %v485
    %489 = vrot.lane.b32.xlu0 %v487, 32
    %v490 = vpop.permute.xlu0 %489
    %v492 = vadd.f32 %v482, %v490
    %v493 = vtanh.pop %v492
    %495 = vrot.lane.b32.xlu0 %v493, 64
    %v496 = vpop.permute.xlu0 %495
    %v498 = vmul.f32 %v478, %v496
    %v500 = vrot.slane %v498, 2
    %501 = vrot.lane.b32.xlu0 %v500, 32
    %v502 = vpop.permute.xlu0 %501
    %v503 = vsel %vm113, %v502, 0
    %505 = vmatpush.msra.mxu0 0.0
    %506 = vmatpush.msra.mxu0 0.0
    %507 = vmatpush.msra.mxu0 0.0
    %508 = vmatpush.msra.mxu0 0.0
    %509 = vmatpush.msra.mxu0 0.0
    %510 = vmatpush.msra.mxu0 0.0
    %511 = vmatpush.msra.mxu0 0.0
    %512 = vmatpush.msra.mxu0 0.0
    %513 = vmatpush.msra.mxu0 0.0
    %514 = vmatpush.msra.mxu0 0.0
    %515 = vmatpush.msra.mxu0 0.0
    %516 = vmatpush.msra.mxu0 0.0
    %517 = vmatpush.msra.mxu0 %v174
    %518 = vmatpush.msra.mxu0 %v173
    %519 = vmatpush.msra.mxu0 %v172
    %520 = vmatpush.msra.mxu0 %v171
    %521 = vmatmul.f32.gmra.mxu0 %v503
    %v522 = vpop.f32.mrf.mxu0
    %v523 = vadd.f32 0.0, %v522
    %524 = vdwg.mxu0
    %v526 = vrot.slane %v523, 4
    %v528 = vadd.f32 %v164, %v526
    %v529 = vtanh.pop %v528
    %v530 = vmul.f32 %v529, 0.5
    %v531 = vadd.f32 %v530, 0.5
    %v533 = vrot.slane %v492, 6
    %v535 = vmul.f32 %v531, %v533
    %537 = vrot.lane.b32.xlu0 %v529, 64
    %v538 = vpop.permute.xlu0 %537
    %v540 = vmul.f32 %v531, %v538
    %542 = vrot.lane.b32.xlu0 %v540, 32
    %v543 = vpop.permute.xlu0 %542
    %v545 = vadd.f32 %v535, %v543
    %v546 = vtanh.pop %v545
    %548 = vrot.lane.b32.xlu0 %v546, 64
    %v549 = vpop.permute.xlu0 %548
    %v551 = vmul.f32 %v531, %v549
    %v553 = vrot.slane %v551, 4
    %554 = vrot.lane.b32.xlu0 %v553, 32
    %v555 = vpop.permute.xlu0 %554
    %v556 = vsel %vm113, %v555, 0
    %558 = vmatpush.msra.mxu0 0.0
    %559 = vmatpush.msra.mxu0 0.0
    %560 = vmatpush.msra.mxu0 0.0
    %561 = vmatpush.msra.mxu0 0.0
    %562 = vmatpush.msra.mxu0 0.0
    %563 = vmatpush.msra.mxu0 0.0
    %564 = vmatpush.msra.mxu0 0.0
    %565 = vmatpush.msra.mxu0 0.0
    %566 = vmatpush.msra.mxu0 0.0
    %567 = vmatpush.msra.mxu0 0.0
    %568 = vmatpush.msra.mxu0 0.0
    %569 = vmatpush.msra.mxu0 0.0
    %570 = vmatpush.msra.mxu0 %v174
    %571 = vmatpush.msra.mxu0 %v173
    %572 = vmatpush.msra.mxu0 %v172
    %573 = vmatpush.msra.mxu0 %v171
    %574 = vmatmul.f32.gmra.mxu0 %v556
    %v575 = vpop.f32.mrf.mxu0
    %v576 = vadd.f32 0.0, %v575
    %577 = vdwg.mxu0
    %v579 = vrot.slane %v576, 2
    %v581 = vadd.f32 %v169, %v579
    %v582 = vtanh.pop %v581
    %v583 = vmul.f32 %v582, 0.5
    %v584 = vadd.f32 %v583, 0.5
    %v586 = vrot.slane %v545, 6
    %v588 = vmul.f32 %v584, %v586
    %590 = vrot.lane.b32.xlu0 %v582, 64
    %v591 = vpop.permute.xlu0 %590
    %v593 = vmul.f32 %v584, %v591
    %595 = vrot.lane.b32.xlu0 %v593, 32
    %v596 = vpop.permute.xlu0 %595
    %v598 = vadd.f32 %v588, %v596
    %v599 = vtanh.pop %v598
    %601 = vrot.lane.b32.xlu0 %v599, 64
    %v602 = vpop.permute.xlu0 %601
    %v604 = vmul.f32 %v584, %v602
    %v606 = vrot.slane %v604, 6
    %607 = vrot.lane.b32.xlu0 %v606, 32
    %v608 = vpop.permute.xlu0 %607
    %v609 = vsel %vm113, %v608, 0
    %611 = vmatpush.msra.mxu0 0.0
    %612 = vmatpush.msra.mxu0 0.0
    %613 = vmatpush.msra.mxu0 0.0
    %614 = vmatpush.msra.mxu0 0.0
    %615 = vmatpush.msra.mxu0 0.0
    %616 = vmatpush.msra.mxu0 0.0
    %617 = vmatpush.msra.mxu0 0.0
    %618 = vmatpush.msra.mxu0 0.0
    %619 = vmatpush.msra.mxu0 0.0
    %620 = vmatpush.msra.mxu0 0.0
    %621 = vmatpush.msra.mxu0 0.0
    %622 = vmatpush.msra.mxu0 0.0
    %623 = vmatpush.msra.mxu0 %v174
    %624 = vmatpush.msra.mxu0 %v173
    %625 = vmatpush.msra.mxu0 %v172
    %626 = vmatpush.msra.mxu0 %v171
    %627 = vmatmul.f32.gmra.mxu0 %v609
    %v628 = vpop.f32.mrf.mxu0
    %v629 = vadd.f32 0.0, %v628
    %630 = vdwg.mxu0
    %v631 = vadd.f32 %v170, %v629
    %v632 = vtanh.pop %v631
    %v633 = vmul.f32 %v632, 0.5
    %v634 = vadd.f32 %v633, 0.5
    %v636 = vrot.slane %v598, 6
    %v638 = vmul.f32 %v634, %v636
    %640 = vrot.lane.b32.xlu0 %v632, 64
    %v641 = vpop.permute.xlu0 %640
    %v643 = vmul.f32 %v634, %v641
    %645 = vrot.lane.b32.xlu0 %v643, 32
    %v646 = vpop.permute.xlu0 %645
    %v648 = vadd.f32 %v638, %v646
    %v649 = vtanh.pop %v648
    %651 = vrot.lane.b32.xlu0 %v649, 64
    %v652 = vpop.permute.xlu0 %651
    %v654 = vmul.f32 %v634, %v652
    %v655 = vld [vmem:[%s6] sm:$0x1]
    %v657 = vperm.slane %v655, 0
    %658 = vrot.lane.b32.xlu0 %v657, 96
    %v659 = vpop.permute.xlu0 %658
    %v661 = vmul.f32 %v654, %v659
    %663 = vrot.lane.b32.xlu0 %v661, 32
    %v664 = vpop.permute.xlu0 %663
    %vm666 = vcmask 254976
    %v667 = vsel %vm666, %v664, 0.0
    %668 = vadd.xlane.f32.xlu0 %v667
    %v669 = vpop.xlane.xlu0 %668
    %v670 = vld [vmem:[#allocation2] sm:$0x1]
    %v672 = vperm.slane %v670, 0
    %v674 = vadd.f32 %v669, %v672
    %vm675 = vcmask 1024
    %676 = vst.msk [vmem:[%s8] sm:$0x3] %vm675, %v674
    // Predicated region
    $region42: #{tpu_custom_call.1} parent=1 // pred_check
      _
    $region43: #{tpu_custom_call.1} parent=1 // pred_check_branch
      %678 = sbr.rel (0) target = $region45
    $region44: #{tpu_custom_call.1} parent=1 // pred_region
      _
    $region45: #{tpu_custom_call.1} parent=1 // pred_fallthru
      _
    // Predicated region
    $region46: #{tpu_custom_call.1} parent=1 // pred_check
      _
    $region47: #{tpu_custom_call.1} parent=1 // pred_check_branch
      %680 = sbr.rel (0) target = $region49
    $region48: #{tpu_custom_call.1} parent=1 // pred_region
      _
    $region49: #{tpu_custom_call.1} parent=1 // pred_fallthru
      _
    %681 = vsyncpa [#allocation4], 1
    %682 = vsyncpa [#allocation6], 1

</llo_original>
